<compile_context>
chip_gen: v7x
topology: tpu7x:2x2x1
jax: 0.10.0
libtpu: 0.0.40
codegen_flags: <defaults>
</compile_context>

<pallas_src>
import functools
import math

import jax
import jax.numpy as jnp
from jax import lax
from jax.experimental import pallas as pl
from jax.experimental.pallas import tpu as pltpu

NUM_LAYERS = 3
LN_EPS = 1e-5
_LANE = 128


def _gelu_exact(x):
    # PyTorch nn.GELU() default (approximate='none'): 0.5*x*(1 + erf(x/sqrt(2)))
    return 0.5 * x * (1.0 + lax.erf(x * (1.0 / math.sqrt(2.0))))


def _round_up(v, m):
    return ((v + m - 1) // m) * m


def refiner_kernel(*refs, d_true, num_layers):
    # refs = (x_ref, [w_t, bias] * num_layers, out_ref)
    x_ref = refs[0]
    out_ref = refs[-1]
    params = refs[1:-1]

    h = x_ref[...].astype(jnp.float32)          # (TM, Dp) activation tile
    dp = h.shape[-1]
    inv_d = 1.0 / float(d_true)

    # Lane mask for padded hidden dims (pad columns of h are always exactly 0:
    # input is zero-padded and padded weight columns / bias entries are 0, and
    # GELU(0) == 0, so sums over the padded lanes are unaffected except for the
    # (h - mu) term, which we mask).
    if d_true != dp:
        lane = lax.broadcasted_iota(jnp.int32, (1, dp), 1)
        mask = (lane < d_true).astype(jnp.float32)
    else:
        mask = None

    for l in range(num_layers):
        w_t = params[2 * l + 0][...]                          # (Dp, Dp), LN-scale folded in
        bias = params[2 * l + 1][...].astype(jnp.float32)     # (1, Dp), LN-shift folded in

        # LayerNorm statistics over the true hidden dim (population variance).
        mu = jnp.sum(h, axis=-1, keepdims=True) * inv_d
        diff = h - mu
        if mask is not None:
            diff = diff * mask
        var = jnp.sum(diff * diff, axis=-1, keepdims=True) * inv_d
        hn = diff * lax.rsqrt(var + LN_EPS)

        # Linear on MXU (bf16 inputs in the production path, f32 accumulate) + exact GELU.
        y = jnp.dot(hn.astype(w_t.dtype), w_t,
                    preferred_element_type=jnp.float32) + bias
        h = _gelu_exact(y)

    out_ref[...] = h.astype(out_ref.dtype)


def prepare_refiner_params(params, *, weight_dtype=jnp.bfloat16):
    """One-time parameter prep.

    For each (gamma, beta, weight, bias):
      * transpose W (D_out, D_in) -> W^T (D_in, D_out) so the kernel does x @ W^T,
      * fold the LayerNorm affine into the linear layer (in f32):
            W'^T = gamma[:, None] * W^T,   b' = beta @ W^T + bias,
      * zero-pad the hidden dim up to a multiple of 128 (lane-dense),
      * cast W'^T to `weight_dtype` (bf16 by default — native MXU path); keep bias f32.
    """
    prepped = []
    for gamma, beta, weight, bias in params:
        d = int(gamma.shape[0])
        dp = max(_round_up(d, _LANE), _LANE)
        gamma = jnp.asarray(gamma, jnp.float32)
        beta = jnp.asarray(beta, jnp.float32)
        weight = jnp.asarray(weight, jnp.float32)
        bias = jnp.asarray(bias, jnp.float32)

        w_t = weight.T                          # (D_in, D_out)
        w_fold = gamma[:, None] * w_t           # fold LN scale (f32)
        b_fold = beta @ w_t + bias              # fold LN shift (f32)

        if dp != d:
            w_fold = jnp.pad(w_fold, ((0, dp - d), (0, dp - d)))
            b_fold = jnp.pad(b_fold, (0, dp - d))

        prepped.append((
            jnp.asarray(w_fold, dtype=weight_dtype),
            jnp.reshape(b_fold, (1, dp)),       # stays f32
        ))
    return prepped


@functools.partial(jax.jit,
                   static_argnames=("tm", "core_parallel", "vmem_limit_bytes"))
def prompt_token_refiner(x, prepped_params, *, tm=256, core_parallel=False,
                         vmem_limit_bytes=None):
    """x: (B, S, D); prepped_params: output of prepare_refiner_params."""
    B, S, D = x.shape
    Dp = int(prepped_params[0][0].shape[0])
    num_layers = len(prepped_params)
    M = B * S
    x2 = x.reshape(M, D)

    # Token tile: multiple of 8 (f32 sublane). Sweep tm per generation
    # (512-1024 on v5e/v6e when D is small; cap ~256-512 on v7x).
    tm_eff = _round_up(min(tm, _round_up(M, 8)), 8)
    Mp = _round_up(M, tm_eff)
    if Mp != M or Dp != D:
        x2 = jnp.pad(x2, ((0, Mp - M), (0, Dp - D)))
    grid = (Mp // tm_eff,)

    flat_args = [x2]
    in_specs = [pl.BlockSpec((tm_eff, Dp), lambda i: (i, 0))]
    for w_t, bias in prepped_params:
        flat_args += [w_t, bias]
        # Constant block index -> params stay resident across the grid; a single
        # buffer (Buffered(1)) avoids pointless double-buffering of big weights.
        in_specs += [
            pl.BlockSpec((Dp, Dp), lambda i: (0, 0), pipeline_mode=pl.Buffered(1)),
            pl.BlockSpec((1, Dp), lambda i: (0, 0), pipeline_mode=pl.Buffered(1)),
        ]

    x_itemsize = jnp.dtype(x.dtype).itemsize
    param_bytes = sum(
        int(a.size) * jnp.dtype(a.dtype).itemsize
        for layer in prepped_params for a in layer
    )

    if vmem_limit_bytes is None:
        act_bytes = 2 * 2 * tm_eff * Dp * x_itemsize   # x/out double buffers
        interm_bytes = 6 * tm_eff * Dp * 4             # live f32 intermediates (h, diff, hn, y, ...)
        needed = param_bytes + act_bytes + interm_bytes
        # 2x headroom; cap at 56 MiB (safe within v7x's 64 MiB/TC, still well
        # above the 16/32 MiB scoped defaults on v5e/v6e).
        vmem_limit_bytes = int(min(max(needed * 2, 32 * 1024 * 1024),
                                   56 * 1024 * 1024))

    cost = pl.CostEstimate(
        flops=2 * num_layers * Mp * Dp * Dp,
        transcendentals=num_layers * Mp * Dp,          # erf per element per layer
        bytes_accessed=2 * Mp * Dp * x_itemsize + param_bytes,
    )

    kernel = functools.partial(refiner_kernel, d_true=D, num_layers=num_layers)

    out = pl.pallas_call(
        kernel,
        out_shape=jax.ShapeDtypeStruct((Mp, Dp), x.dtype),
        grid_spec=pltpu.PrefetchScalarGridSpec(
            num_scalar_prefetch=0,
            grid=grid,
            in_specs=in_specs,
            out_specs=pl.BlockSpec((tm_eff, Dp), lambda i: (i, 0)),
        ),
        compiler_params=pltpu.CompilerParams(
            # Token tiles are independent. CORE_PARALLEL shards them across the
            # two TensorCores on v7x; plain "parallel" elsewhere.
            dimension_semantics=((pltpu.CORE_PARALLEL,) if core_parallel
                                 else ("parallel",)),
            vmem_limit_bytes=vmem_limit_bytes,
        ),
        cost_estimate=cost,
    )(*flat_args)
    return out[:M, :D].reshape(B, S, D)


def reference_jax(x, params):
    h = x.astype(jnp.float32)
    for gamma, beta, weight, bias in params:
        mu = jnp.mean(h, axis=-1, keepdims=True)
        var = jnp.mean((h - mu) ** 2, axis=-1, keepdims=True)
        hn = (h - mu) / jnp.sqrt(var + LN_EPS)
        hn = hn * gamma + beta
        y = hn @ weight.T + bias
        h = 0.5 * y * (1.0 + lax.erf(y / math.sqrt(2.0)))
    return h


if __name__ == "__main__":
    key = jax.random.PRNGKey(0)

    B, S, D = 2, 8, 32  # batch=2, seq=8, hidden=32
    key, kx = jax.random.split(key)
    x = jax.random.normal(kx, (B, S, D), dtype=jnp.float32)

    # Deterministic parameter init (shapes per nn.LayerNorm(D) / nn.Linear(D, D)).
    params = []
    for _ in range(NUM_LAYERS):
        key, kg, kb, kw, kbb = jax.random.split(key, 5)
        gamma = 1.0 + 0.05 * jax.random.normal(kg, (D,), dtype=jnp.float32)
        beta = 0.05 * jax.random.normal(kb, (D,), dtype=jnp.float32)
        bound = 1.0 / math.sqrt(D)
        weight = jax.random.uniform(kw, (D, D), minval=-bound, maxval=bound,
                                    dtype=jnp.float32)
        bias = jax.random.uniform(kbb, (D,), minval=-bound, maxval=bound,
                                  dtype=jnp.float32)
        params.append((gamma, beta, weight, bias))

    ref = reference_jax(x, params)

    # f32 weight path: strict parity with the PyTorch/JAX reference.
    prepped_f32 = prepare_refiner_params(params, weight_dtype=jnp.float32)
    out_f32 = jax.block_until_ready(prompt_token_refiner(x, prepped_f32))
    assert out_f32.shape == (B, S, D)
    assert jnp.allclose(out_f32, ref, atol=1e-4, rtol=1e-4), (
        f"f32 path max abs err {jnp.max(jnp.abs(out_f32 - ref))}"
    )

    # bf16 weight path (production default): tolerance gate, looser bound.
    prepped_bf16 = prepare_refiner_params(params)  # weight_dtype=jnp.bfloat16
    out_bf16 = jax.block_until_ready(prompt_token_refiner(x, prepped_bf16))
    assert out_bf16.shape == (B, S, D)
    assert jnp.allclose(out_bf16, ref, atol=5e-2, rtol=5e-2), (
        f"bf16 path max abs err {jnp.max(jnp.abs(out_bf16 - ref))}"
    )

    print("KERNEL_OK")
</pallas_src>

<mosaic_0001>
module attributes {stable_mosaic.version = 11 : i64} {
  func.func @refiner_kernel(%arg0: i32, %arg1: memref<16x128xf32, #tpu.memory_space<vmem>>, %arg2: memref<128x128xf32, #tpu.memory_space<vmem>>, %arg3: memref<1x128xf32, #tpu.memory_space<vmem>>, %arg4: memref<128x128xf32, #tpu.memory_space<vmem>>, %arg5: memref<1x128xf32, #tpu.memory_space<vmem>>, %arg6: memref<128x128xf32, #tpu.memory_space<vmem>>, %arg7: memref<1x128xf32, #tpu.memory_space<vmem>>, %arg8: memref<16x128xf32, #tpu.memory_space<vmem>>) attributes {dimension_semantics = [#tpu.dimension_semantics<parallel>], iteration_bounds = array<i64: 1>, scalar_prefetch = 0 : i64, scratch_operands = 0 : i64, tpu.core_type = #tpu.core_type<tc>, window_params = [{transform_indices = @transform_0, window_bounds = array<i64: 16, 128>}, {pipeline_mode = #tpu.pipeline_mode<synchronous>, transform_indices = @transform_1, window_bounds = array<i64: 128, 128>}, {pipeline_mode = #tpu.pipeline_mode<synchronous>, transform_indices = @transform_2, window_bounds = array<i64: 1, 128>}, {pipeline_mode = #tpu.pipeline_mode<synchronous>, transform_indices = @transform_3, window_bounds = array<i64: 128, 128>}, {pipeline_mode = #tpu.pipeline_mode<synchronous>, transform_indices = @transform_4, window_bounds = array<i64: 1, 128>}, {pipeline_mode = #tpu.pipeline_mode<synchronous>, transform_indices = @transform_5, window_bounds = array<i64: 128, 128>}, {pipeline_mode = #tpu.pipeline_mode<synchronous>, transform_indices = @transform_6, window_bounds = array<i64: 1, 128>}, {transform_indices = @transform_7, window_bounds = array<i64: 16, 128>}]} {
    %c0 = arith.constant 0 : index
    %c0_0 = arith.constant 0 : index
    %0 = vector.load %arg1[%c0, %c0_0] : memref<16x128xf32, #tpu.memory_space<vmem>>, vector<16x128xf32>
    %1 = tpu.iota {dimensions = array<i32: 1>} : vector<1x128xi32>
    %c32_i32 = arith.constant 32 : i32
    %2 = vector.broadcast %c32_i32 : i32 to vector<1x128xi32>
    %3 = arith.cmpi slt, %1, %2 : vector<1x128xi32>
    %4 = arith.extui %3 : vector<1x128xi1> to vector<1x128xi32>
    %5 = arith.sitofp %4 : vector<1x128xi32> to vector<1x128xf32>
    %c0_1 = arith.constant 0 : index
    %c0_2 = arith.constant 0 : index
    %6 = vector.load %arg2[%c0_1, %c0_2] : memref<128x128xf32, #tpu.memory_space<vmem>>, vector<128x128xf32>
    %c0_3 = arith.constant 0 : index
    %c0_4 = arith.constant 0 : index
    %7 = vector.load %arg3[%c0_3, %c0_4] : memref<1x128xf32, #tpu.memory_space<vmem>>, vector<1x128xf32>
    %cst = arith.constant dense<0.000000e+00> : vector<16xf32>
    %8 = vector.multi_reduction <add>, %0, %cst [1] : vector<16x128xf32> to vector<16xf32>
    %9 = vector.shape_cast %8 : vector<16xf32> to vector<16x1xf32>
    %cst_5 = arith.constant 3.125000e-02 : f32
    %10 = vector.broadcast %cst_5 : f32 to vector<16x1xf32>
    %11 = arith.mulf %9, %10 : vector<16x1xf32>
    %12 = vector.broadcast %11 : vector<16x1xf32> to vector<16x128xf32>
    %13 = arith.subf %0, %12 : vector<16x128xf32>
    %14 = vector.broadcast %5 : vector<1x128xf32> to vector<16x128xf32>
    %15 = arith.mulf %13, %14 : vector<16x128xf32>
    %16 = arith.mulf %15, %15 : vector<16x128xf32>
    %cst_6 = arith.constant dense<0.000000e+00> : vector<16xf32>
    %17 = vector.multi_reduction <add>, %16, %cst_6 [1] : vector<16x128xf32> to vector<16xf32>
    %18 = vector.shape_cast %17 : vector<16xf32> to vector<16x1xf32>
    %cst_7 = arith.constant 3.125000e-02 : f32
    %19 = vector.broadcast %cst_7 : f32 to vector<16x1xf32>
    %20 = arith.mulf %18, %19 : vector<16x1xf32>
    %cst_8 = arith.constant 9.99999974E-6 : f32
    %21 = vector.broadcast %cst_8 : f32 to vector<16x1xf32>
    %22 = arith.addf %20, %21 : vector<16x1xf32>
    %23 = math.rsqrt %22 : vector<16x1xf32>
    %24 = vector.broadcast %23 : vector<16x1xf32> to vector<16x128xf32>
    %25 = arith.mulf %15, %24 : vector<16x128xf32>
    %cst_9 = arith.constant dense<0.000000e+00> : vector<16x128xf32>
    %26 = tpu.matmul %25, %6, %cst_9 {dimension_numbers = #tpu.dot_dimension_numbers<[1], [0], [0], [1], [0, 0, 1, 1], [], []>} : vector<16x128xf32>, vector<128x128xf32>, vector<16x128xf32> -> vector<16x128xf32>
    %27 = vector.broadcast %7 : vector<1x128xf32> to vector<16x128xf32>
    %28 = arith.addf %26, %27 : vector<16x128xf32>
    %cst_10 = arith.constant 5.000000e-01 : f32
    %29 = vector.broadcast %cst_10 : f32 to vector<16x128xf32>
    %30 = arith.mulf %29, %28 : vector<16x128xf32>
    %cst_11 = arith.constant 0.707106769 : f32
    %31 = vector.broadcast %cst_11 : f32 to vector<16x128xf32>
    %32 = arith.mulf %28, %31 : vector<16x128xf32>
    %33 = math.erf %32 : vector<16x128xf32>
    %cst_12 = arith.constant 1.000000e+00 : f32
    %34 = vector.broadcast %cst_12 : f32 to vector<16x128xf32>
    %35 = arith.addf %34, %33 : vector<16x128xf32>
    %36 = arith.mulf %30, %35 : vector<16x128xf32>
    %c0_13 = arith.constant 0 : index
    %c0_14 = arith.constant 0 : index
    %37 = vector.load %arg4[%c0_13, %c0_14] : memref<128x128xf32, #tpu.memory_space<vmem>>, vector<128x128xf32>
    %c0_15 = arith.constant 0 : index
    %c0_16 = arith.constant 0 : index
    %38 = vector.load %arg5[%c0_15, %c0_16] : memref<1x128xf32, #tpu.memory_space<vmem>>, vector<1x128xf32>
    %cst_17 = arith.constant dense<0.000000e+00> : vector<16xf32>
    %39 = vector.multi_reduction <add>, %36, %cst_17 [1] : vector<16x128xf32> to vector<16xf32>
    %40 = vector.shape_cast %39 : vector<16xf32> to vector<16x1xf32>
    %cst_18 = arith.constant 3.125000e-02 : f32
    %41 = vector.broadcast %cst_18 : f32 to vector<16x1xf32>
    %42 = arith.mulf %40, %41 : vector<16x1xf32>
    %43 = vector.broadcast %42 : vector<16x1xf32> to vector<16x128xf32>
    %44 = arith.subf %36, %43 : vector<16x128xf32>
    %45 = vector.broadcast %5 : vector<1x128xf32> to vector<16x128xf32>
    %46 = arith.mulf %44, %45 : vector<16x128xf32>
    %47 = arith.mulf %46, %46 : vector<16x128xf32>
    %cst_19 = arith.constant dense<0.000000e+00> : vector<16xf32>
    %48 = vector.multi_reduction <add>, %47, %cst_19 [1] : vector<16x128xf32> to vector<16xf32>
    %49 = vector.shape_cast %48 : vector<16xf32> to vector<16x1xf32>
    %cst_20 = arith.constant 3.125000e-02 : f32
    %50 = vector.broadcast %cst_20 : f32 to vector<16x1xf32>
    %51 = arith.mulf %49, %50 : vector<16x1xf32>
    %cst_21 = arith.constant 9.99999974E-6 : f32
    %52 = vector.broadcast %cst_21 : f32 to vector<16x1xf32>
    %53 = arith.addf %51, %52 : vector<16x1xf32>
    %54 = math.rsqrt %53 : vector<16x1xf32>
    %55 = vector.broadcast %54 : vector<16x1xf32> to vector<16x128xf32>
    %56 = arith.mulf %46, %55 : vector<16x128xf32>
    %cst_22 = arith.constant dense<0.000000e+00> : vector<16x128xf32>
    %57 = tpu.matmul %56, %37, %cst_22 {dimension_numbers = #tpu.dot_dimension_numbers<[1], [0], [0], [1], [0, 0, 1, 1], [], []>} : vector<16x128xf32>, vector<128x128xf32>, vector<16x128xf32> -> vector<16x128xf32>
    %58 = vector.broadcast %38 : vector<1x128xf32> to vector<16x128xf32>
    %59 = arith.addf %57, %58 : vector<16x128xf32>
    %cst_23 = arith.constant 5.000000e-01 : f32
    %60 = vector.broadcast %cst_23 : f32 to vector<16x128xf32>
    %61 = arith.mulf %60, %59 : vector<16x128xf32>
    %cst_24 = arith.constant 0.707106769 : f32
    %62 = vector.broadcast %cst_24 : f32 to vector<16x128xf32>
    %63 = arith.mulf %59, %62 : vector<16x128xf32>
    %64 = math.erf %63 : vector<16x128xf32>
    %cst_25 = arith.constant 1.000000e+00 : f32
    %65 = vector.broadcast %cst_25 : f32 to vector<16x128xf32>
    %66 = arith.addf %65, %64 : vector<16x128xf32>
    %67 = arith.mulf %61, %66 : vector<16x128xf32>
    %c0_26 = arith.constant 0 : index
    %c0_27 = arith.constant 0 : index
    %68 = vector.load %arg6[%c0_26, %c0_27] : memref<128x128xf32, #tpu.memory_space<vmem>>, vector<128x128xf32>
    %c0_28 = arith.constant 0 : index
    %c0_29 = arith.constant 0 : index
    %69 = vector.load %arg7[%c0_28, %c0_29] : memref<1x128xf32, #tpu.memory_space<vmem>>, vector<1x128xf32>
    %cst_30 = arith.constant dense<0.000000e+00> : vector<16xf32>
    %70 = vector.multi_reduction <add>, %67, %cst_30 [1] : vector<16x128xf32> to vector<16xf32>
    %71 = vector.shape_cast %70 : vector<16xf32> to vector<16x1xf32>
    %cst_31 = arith.constant 3.125000e-02 : f32
    %72 = vector.broadcast %cst_31 : f32 to vector<16x1xf32>
    %73 = arith.mulf %71, %72 : vector<16x1xf32>
    %74 = vector.broadcast %73 : vector<16x1xf32> to vector<16x128xf32>
    %75 = arith.subf %67, %74 : vector<16x128xf32>
    %76 = vector.broadcast %5 : vector<1x128xf32> to vector<16x128xf32>
    %77 = arith.mulf %75, %76 : vector<16x128xf32>
    %78 = arith.mulf %77, %77 : vector<16x128xf32>
    %cst_32 = arith.constant dense<0.000000e+00> : vector<16xf32>
    %79 = vector.multi_reduction <add>, %78, %cst_32 [1] : vector<16x128xf32> to vector<16xf32>
    %80 = vector.shape_cast %79 : vector<16xf32> to vector<16x1xf32>
    %cst_33 = arith.constant 3.125000e-02 : f32
    %81 = vector.broadcast %cst_33 : f32 to vector<16x1xf32>
    %82 = arith.mulf %80, %81 : vector<16x1xf32>
    %cst_34 = arith.constant 9.99999974E-6 : f32
    %83 = vector.broadcast %cst_34 : f32 to vector<16x1xf32>
    %84 = arith.addf %82, %83 : vector<16x1xf32>
    %85 = math.rsqrt %84 : vector<16x1xf32>
    %86 = vector.broadcast %85 : vector<16x1xf32> to vector<16x128xf32>
    %87 = arith.mulf %77, %86 : vector<16x128xf32>
    %cst_35 = arith.constant dense<0.000000e+00> : vector<16x128xf32>
    %88 = tpu.matmul %87, %68, %cst_35 {dimension_numbers = #tpu.dot_dimension_numbers<[1], [0], [0], [1], [0, 0, 1, 1], [], []>} : vector<16x128xf32>, vector<128x128xf32>, vector<16x128xf32> -> vector<16x128xf32>
    %89 = vector.broadcast %69 : vector<1x128xf32> to vector<16x128xf32>
    %90 = arith.addf %88, %89 : vector<16x128xf32>
    %cst_36 = arith.constant 5.000000e-01 : f32
    %91 = vector.broadcast %cst_36 : f32 to vector<16x128xf32>
    %92 = arith.mulf %91, %90 : vector<16x128xf32>
    %cst_37 = arith.constant 0.707106769 : f32
    %93 = vector.broadcast %cst_37 : f32 to vector<16x128xf32>
    %94 = arith.mulf %90, %93 : vector<16x128xf32>
    %95 = math.erf %94 : vector<16x128xf32>
    %cst_38 = arith.constant 1.000000e+00 : f32
    %96 = vector.broadcast %cst_38 : f32 to vector<16x128xf32>
    %97 = arith.addf %96, %95 : vector<16x128xf32>
    %98 = arith.mulf %92, %97 : vector<16x128xf32>
    %c0_39 = arith.constant 0 : index
    %c0_40 = arith.constant 0 : index
    %99 = vector.load %arg8[%c0_39, %c0_40] : memref<16x128xf32, #tpu.memory_space<vmem>>, vector<16x128xf32>
    tpu.vector_store %arg8[%c0_39, %c0_40], %98 {strides = array<i32>} : memref<16x128xf32, #tpu.memory_space<vmem>>, vector<16x128xf32>,
    return
  }
  func.func @transform_0(%arg0: i32) -> (i32, i32) {
    %c0_i32 = arith.constant 0 : i32
    %c0_i32_0 = arith.constant 0 : i32
    return %arg0, %c0_i32 : i32, i32
  }
  func.func @transform_1(%arg0: i32) -> (i32, i32) {
    %c0_i32 = arith.constant 0 : i32
    %c0_i32_0 = arith.constant 0 : i32
    %c0_i32_1 = arith.constant 0 : i32
    return %c0_i32, %c0_i32_0 : i32, i32
  }
  func.func @transform_2(%arg0: i32) -> (i32, i32) {
    %c0_i32 = arith.constant 0 : i32
    %c0_i32_0 = arith.constant 0 : i32
    %c0_i32_1 = arith.constant 0 : i32
    return %c0_i32, %c0_i32_0 : i32, i32
  }
  func.func @transform_3(%arg0: i32) -> (i32, i32) {
    %c0_i32 = arith.constant 0 : i32
    %c0_i32_0 = arith.constant 0 : i32
    %c0_i32_1 = arith.constant 0 : i32
    return %c0_i32, %c0_i32_0 : i32, i32
  }
  func.func @transform_4(%arg0: i32) -> (i32, i32) {
    %c0_i32 = arith.constant 0 : i32
    %c0_i32_0 = arith.constant 0 : i32
    %c0_i32_1 = arith.constant 0 : i32
    return %c0_i32, %c0_i32_0 : i32, i32
  }
  func.func @transform_5(%arg0: i32) -> (i32, i32) {
    %c0_i32 = arith.constant 0 : i32
    %c0_i32_0 = arith.constant 0 : i32
    %c0_i32_1 = arith.constant 0 : i32
    return %c0_i32, %c0_i32_0 : i32, i32
  }
  func.func @transform_6(%arg0: i32) -> (i32, i32) {
    %c0_i32 = arith.constant 0 : i32
    %c0_i32_0 = arith.constant 0 : i32
    %c0_i32_1 = arith.constant 0 : i32
    return %c0_i32, %c0_i32_0 : i32, i32
  }
  func.func @transform_7(%arg0: i32) -> (i32, i32) {
    %c0_i32 = arith.constant 0 : i32
    %c0_i32_0 = arith.constant 0 : i32
    return %arg0, %c0_i32 : i32, i32
  }
}

</mosaic_0001>

<llo_original>
// kernel: prompt_token_refiner.1
$region0: #{prompt_token_refiner.1}
  #allocation0 [shape = 'u32[]', space=smem, size = 0x4, offset = 0x4, fixed_abs, tag = 'smem constant byte address 0x4 - core index']
  #allocation1 [shape = 'u32[144,128]{1,0:T(1,128)}', space=vmem, size = 0x12000, scoped, tag = 'internal scratch']
  %s0 = inlined_call_operand.vmem [shape: f32[16,128], index: 0, kind: input, shape index: {}]
  %s1 = inlined_call_operand.hbm [shape: f32[128,128], index: 1, kind: input, shape index: {}]
  %s2 = inlined_call_operand.vmem [shape: f32[1,128], index: 2, kind: input, shape index: {}]
  %s3 = inlined_call_operand.hbm [shape: f32[128,128], index: 3, kind: input, shape index: {}]
  %s4 = inlined_call_operand.vmem [shape: f32[1,128], index: 4, kind: input, shape index: {}]
  %s5 = inlined_call_operand.hbm [shape: f32[128,128], index: 5, kind: input, shape index: {}]
  %s6 = inlined_call_operand.vmem [shape: f32[1,128], index: 6, kind: input, shape index: {}]
  %s7 = inlined_call_operand.vmem [shape: f32[16,128], index: 7, kind: output, shape index: {}]
  %s8 = sld [smem:[#allocation0]]
  $region50: #{prompt_token_refiner.1} parent=0
    _
  %s10 = ssub.s32 1, %s8
  %s11 = scalar_select 0, %s10, %s8
  $region1: #{prompt_token_refiner.1} parent=0
    #allocation2 [shape = 'u8[65536]{0}', space=vmem, size = 0x10000, scoped, tag = 'input window, operand 1, single buffered']
    #allocation3 [shape = 's32[1]{0}', space=sflag, size = 0x4, scoped, tag = 'scoped memory for prompt_token_refiner.1']
    #allocation4 [shape = 'u8[65536]{0}', space=vmem, size = 0x10000, scoped, tag = 'input window, operand 3, single buffered']
    #allocation5 [shape = 's32[1]{0}', space=sflag, size = 0x4, scoped, tag = 'scoped memory for prompt_token_refiner.1']
    #allocation6 [shape = 'u8[65536]{0}', space=vmem, size = 0x10000, scoped, tag = 'input window, operand 5, single buffered']
    %12 = vsyncpa [#allocation3], 0
    %13 = vsyncpa [#allocation5], 0
    // Predicated region
    $region2: #{prompt_token_refiner.1} parent=1 // pred_check
      _
    $region3: #{prompt_token_refiner.1} parent=1 // pred_check_branch
      %15 = sbr.rel (0) target = $region5
    $region4: #{prompt_token_refiner.1} parent=1 // pred_region
      _
    $region5: #{prompt_token_refiner.1} parent=1 // pred_fallthru
      _
    // Predicated region
    $region6: #{prompt_token_refiner.1} parent=1 // pred_check
      _
    $region7: #{prompt_token_refiner.1} parent=1 // pred_check_branch
      %17 = sbr.rel (0) target = $region9
    $region8: #{prompt_token_refiner.1} parent=1 // pred_region
      %s19 = ssub.s32 2048, 2048
      %20 = vsyncadd [#allocation3], %s19
      %s21 = sshll.u32 [#allocation2], 4
      %s22 = int_to_ptr.vmem [resolvable:$true] %s21
      %27 = dma.hbm_to_vmem [thread:$0]  %s1, 2048, %s22, [#allocation3], 128, 128, 8
    $region9: #{prompt_token_refiner.1} parent=1 // pred_fallthru
      _
    // Predicated region
    $region10: #{prompt_token_refiner.1} parent=1 // pred_check
      _
    $region11: #{prompt_token_refiner.1} parent=1 // pred_check_branch
      %29 = sbr.rel (0) target = $region13
    $region12: #{prompt_token_refiner.1} parent=1 // pred_region
      _
    $region13: #{prompt_token_refiner.1} parent=1 // pred_fallthru
      _
    // Predicated region
    $region14: #{prompt_token_refiner.1} parent=1 // pred_check
      _
    $region15: #{prompt_token_refiner.1} parent=1 // pred_check_branch
      %31 = sbr.rel (0) target = $region17
    $region16: #{prompt_token_refiner.1} parent=1 // pred_region
      %s33 = ssub.s32 2048, 2048
      %34 = vsyncadd [#allocation5], %s33
      %s35 = sshll.u32 [#allocation4], 4
      %s36 = int_to_ptr.vmem [resolvable:$true] %s35
      %41 = dma.hbm_to_vmem [thread:$0]  %s3, 2048, %s36, [#allocation5], 128, 128, 8
    $region17: #{prompt_token_refiner.1} parent=1 // pred_fallthru
      _
    // Predicated region
    $region18: #{prompt_token_refiner.1} parent=1 // pred_check
      _
    $region19: #{prompt_token_refiner.1} parent=1 // pred_check_branch
      %43 = sbr.rel (0) target = $region21
    $region20: #{prompt_token_refiner.1} parent=1 // pred_region
      _
    $region21: #{prompt_token_refiner.1} parent=1 // pred_fallthru
      _
    // Predicated region
    $region22: #{prompt_token_refiner.1} parent=1 // pred_check
      _
    $region23: #{prompt_token_refiner.1} parent=1 // pred_check_branch
      %45 = sbr.rel (0) target = $region25
    $region24: #{prompt_token_refiner.1} parent=1 // pred_region
      %s47 = ssub.s32 2048, 2048
      %48 = vsyncadd [#allocation5], %s47
      %s49 = sshll.u32 [#allocation6], 4
      %s50 = int_to_ptr.vmem [resolvable:$true] %s49
      %55 = dma.hbm_to_vmem [thread:$0]  %s5, 2048, %s50, [#allocation5], 128, 128, 8
    $region25: #{prompt_token_refiner.1} parent=1 // pred_fallthru
      _
    // Predicated region
    $region26: #{prompt_token_refiner.1} parent=1 // pred_check
      _
    $region27: #{prompt_token_refiner.1} parent=1 // pred_check_branch
      %57 = sbr.rel (0) target = $region29
    $region28: #{prompt_token_refiner.1} parent=1 // pred_region
      _
    $region29: #{prompt_token_refiner.1} parent=1 // pred_fallthru
      _
    // Predicated region
    $region30: #{prompt_token_refiner.1} parent=1 // pred_check
      _
    $region31: #{prompt_token_refiner.1} parent=1 // pred_check_branch
      %59 = sbr.rel (0) target = $region33
    $region32: #{prompt_token_refiner.1} parent=1 // pred_region
      %60 = dma.done [#allocation3], 2048
    $region33: #{prompt_token_refiner.1} parent=1 // pred_fallthru
      _
    // Predicated region
    $region34: #{prompt_token_refiner.1} parent=1 // pred_check
      _
    $region35: #{prompt_token_refiner.1} parent=1 // pred_check_branch
      %62 = sbr.rel (0) target = $region37
    $region36: #{prompt_token_refiner.1} parent=1 // pred_region
      %63 = dma.done [#allocation5], 2048
    $region37: #{prompt_token_refiner.1} parent=1 // pred_fallthru
      _
    // Predicated region
    $region38: #{prompt_token_refiner.1} parent=1 // pred_check
      _
    $region39: #{prompt_token_refiner.1} parent=1 // pred_check_branch
      %65 = sbr.rel (0) target = $region41
    $region40: #{prompt_token_refiner.1} parent=1 // pred_region
      %66 = dma.done [#allocation5], 2048
    $region41: #{prompt_token_refiner.1} parent=1 // pred_fallthru
      _
    %v67 = vld [vmem:[%s0] sm:$0xff]
    %v68 = vld [vmem:[%s0 + $0x8] sm:$0xff]
    %v69 = vlaneseq
    %v70 = vand.u32 %v69, 127
    %vm71 = vcmp.lt.s32.totalorder %v70, 32
    %v72 = vsel %vm71, 1, 0
    %v73 = vcvt.s32.f32 %v72
    %v74 = vld [vmem:[#allocation2] sm:$0xff]
    %v75 = vld [vmem:[#allocation2 + $0x8] sm:$0xff]
    %v76 = vld [vmem:[#allocation2 + $0x10] sm:$0xff]
    %v77 = vld [vmem:[#allocation2 + $0x18] sm:$0xff]
    %v78 = vld [vmem:[#allocation2 + $0x20] sm:$0xff]
    %v79 = vld [vmem:[#allocation2 + $0x28] sm:$0xff]
    %v80 = vld [vmem:[#allocation2 + $0x30] sm:$0xff]
    %v81 = vld [vmem:[#allocation2 + $0x38] sm:$0xff]
    %v82 = vld [vmem:[#allocation2 + $0x40] sm:$0xff]
    %v83 = vld [vmem:[#allocation2 + $0x48] sm:$0xff]
    %v84 = vld [vmem:[#allocation2 + $0x50] sm:$0xff]
    %v85 = vld [vmem:[#allocation2 + $0x58] sm:$0xff]
    %v86 = vld [vmem:[#allocation2 + $0x60] sm:$0xff]
    %v87 = vld [vmem:[#allocation2 + $0x68] sm:$0xff]
    %v88 = vld [vmem:[#allocation2 + $0x70] sm:$0xff]
    %v89 = vld [vmem:[#allocation2 + $0x78] sm:$0xff]
    %v90 = vld [vmem:[%s2] sm:$0x1]
    %91 = vadd.xlane.f32.xlu0 %v67
    %v92 = vpop.xlane.xlu0 %91
    %93 = vadd.xlane.f32.xlu0 %v68
    %v94 = vpop.xlane.xlu0 %93
    %v95 = vmul.f32 %v92, 0.03125
    %v96 = vmul.f32 %v94, 0.03125
    %v97 = vsub.f32 %v67, %v95
    %v98 = vsub.f32 %v68, %v96
    %v99 = vmul.f32 %v97, %v73
    %v100 = vmul.f32 %v98, %v73
    %v101 = vmul.f32 %v99, %v99
    %v102 = vmul.f32 %v100, %v100
    %103 = vadd.xlane.f32.xlu0 %v101
    %v104 = vpop.xlane.xlu0 %103
    %105 = vadd.xlane.f32.xlu0 %v102
    %v106 = vpop.xlane.xlu0 %105
    %v107 = vmul.f32 %v104, 0.03125
    %v108 = vmul.f32 %v106, 0.03125
    %v109 = vadd.f32 %v107, 1e-05
    %v110 = vadd.f32 %v108, 1e-05
    %v111 = vrsqrt.pop %v109
    %v112 = vrsqrt.pop %v110
    %v113 = vmul.f32 %v99, %v111
    %v114 = vmul.f32 %v100, %v112
    %v116 = vlaneseq
    %v117 = vshrl.u32 %v116, 7
    %v118 = vsub.s32 0, %v117
    %v119 = vrot.slane %v90, %v118
    %121 = vmatprep.subr.mxu0 0.0
    %122 = vmatpush1.msra.mxu0 %v74
    %123 = vmatprep.subr.mxu0 0.0
    %124 = vmatpush1.msra.mxu0 %v75
    %125 = vmatprep.subr.mxu0 0.0
    %126 = vmatpush1.msra.mxu0 %v76
    %127 = vmatprep.subr.mxu0 0.0
    %128 = vmatpush1.msra.mxu0 %v77
    %129 = vmatprep.subr.mxu0 0.0
    %130 = vmatpush1.msra.mxu0 %v78
    %131 = vmatprep.subr.mxu0 0.0
    %132 = vmatpush1.msra.mxu0 %v79
    %133 = vmatprep.subr.mxu0 0.0
    %134 = vmatpush1.msra.mxu0 %v80
    %135 = vmatprep.subr.mxu0 0.0
    %136 = vmatpush1.msra.mxu0 %v81
    %137 = vmatprep.subr.mxu0 0.0
    %138 = vmatpush1.msra.mxu0 %v82
    %139 = vmatprep.subr.mxu0 0.0
    %140 = vmatpush1.msra.mxu0 %v83
    %141 = vmatprep.subr.mxu0 0.0
    %142 = vmatpush1.msra.mxu0 %v84
    %143 = vmatprep.subr.mxu0 0.0
    %144 = vmatpush1.msra.mxu0 %v85
    %145 = vmatprep.subr.mxu0 0.0
    %146 = vmatpush1.msra.mxu0 %v86
    %147 = vmatprep.subr.mxu0 0.0
    %148 = vmatpush1.msra.mxu0 %v87
    %149 = vmatprep.subr.mxu0 0.0
    %150 = vmatpush1.msra.mxu0 %v88
    %151 = vmatprep.subr.mxu0 0.0
    %152 = vmatpush1.msra.mxu0 %v89
    %153 = vmatprep.subr.mxu0 0.0
    %154 = vmatpush1.msra.mxu0 0.0
    %155 = vmatprep.subr.mxu0 0.0
    %156 = vmatpush1.msra.mxu0 0.0
    %157 = vmatprep.subr.mxu0 0.0
    %158 = vmatpush1.msra.mxu0 0.0
    %159 = vmatprep.subr.mxu0 0.0
    %160 = vmatpush1.msra.mxu0 0.0
    %161 = vmatprep.subr.mxu0 0.0
    %162 = vmatpush1.msra.mxu0 0.0
    %163 = vmatprep.subr.mxu0 0.0
    %164 = vmatpush1.msra.mxu0 0.0
    %165 = vmatprep.subr.mxu0 0.0
    %166 = vmatpush1.msra.mxu0 0.0
    %167 = vmatprep.subr.mxu0 0.0
    %168 = vmatpush1.msra.mxu0 0.0
    %169 = vmatprep.subr.mxu0 0.0
    %170 = vmatpush1.msra.mxu0 0.0
    %171 = vmatprep.subr.mxu0 0.0
    %172 = vmatpush1.msra.mxu0 0.0
    %173 = vmatprep.subr.mxu0 0.0
    %174 = vmatpush1.msra.mxu0 0.0
    %175 = vmatprep.subr.mxu0 0.0
    %176 = vmatpush1.msra.mxu0 0.0
    %177 = vmatprep.subr.mxu0 0.0
    %178 = vmatpush1.msra.mxu0 0.0
    %179 = vmatprep.subr.mxu0 0.0
    %180 = vmatpush1.msra.mxu0 0.0
    %181 = vmatprep.subr.mxu0 0.0
    %182 = vmatpush1.msra.mxu0 0.0
    %183 = vmatprep.subr.mxu0 0.0
    %184 = vmatpush1.msra.mxu0 0.0
    %185 = vmatprep.mubr.f32.mxu0 0.0
    %186 = vmatmul.mubr.f32.gmra.mrb[0].mxu0 %v113
    %v187 = vpop.f32.mrb[0].mxu0
    %v188 = vadd.f32 %v119, %v187
    %v189 = vpop.f32.mrb[0].mxu0
    %190 = vmatprep.mubr.f32.mxu0 0.0
    %191 = vmatmul.mubr.f32.gmra.mrb[0].mxu0 %v114
    %v192 = vpop.f32.mrb[0].mxu0
    %v193 = vadd.f32 %v119, %v192
    %v194 = vpop.f32.mrb[0].mxu0
    %195 = vdwg.mxu0
    %v196 = vmul.f32 %v188, 0.5
    %v197 = vmul.f32 %v193, 0.5
    %v198 = vmul.f32 %v188, 0.70710677
    %v199 = vmul.f32 %v193, 0.70710677
    %v200 = verf.f32.pop %v198
    %v201 = verf.f32.pop %v199
    %v202 = vadd.f32 %v200, 1.0
    %v203 = vadd.f32 %v201, 1.0
    %v204 = vmul.f32 %v196, %v202
    %v205 = vmul.f32 %v197, %v203
    %v206 = vld [vmem:[#allocation4] sm:$0xff]
    %v207 = vld [vmem:[#allocation4 + $0x8] sm:$0xff]
    %v208 = vld [vmem:[#allocation4 + $0x10] sm:$0xff]
    %v209 = vld [vmem:[#allocation4 + $0x18] sm:$0xff]
    %v210 = vld [vmem:[#allocation4 + $0x20] sm:$0xff]
    %v211 = vld [vmem:[#allocation4 + $0x28] sm:$0xff]
    %v212 = vld [vmem:[#allocation4 + $0x30] sm:$0xff]
    %v213 = vld [vmem:[#allocation4 + $0x38] sm:$0xff]
    %v214 = vld [vmem:[#allocation4 + $0x40] sm:$0xff]
    %v215 = vld [vmem:[#allocation4 + $0x48] sm:$0xff]
    %v216 = vld [vmem:[#allocation4 + $0x50] sm:$0xff]
    %v217 = vld [vmem:[#allocation4 + $0x58] sm:$0xff]
    %v218 = vld [vmem:[#allocation4 + $0x60] sm:$0xff]
    %v219 = vld [vmem:[#allocation4 + $0x68] sm:$0xff]
    %v220 = vld [vmem:[#allocation4 + $0x70] sm:$0xff]
    %v221 = vld [vmem:[#allocation4 + $0x78] sm:$0xff]
    %v222 = vld [vmem:[%s4] sm:$0x1]
    %223 = vadd.xlane.f32.xlu0 %v204
    %v224 = vpop.xlane.xlu0 %223
    %225 = vadd.xlane.f32.xlu0 %v205
    %v226 = vpop.xlane.xlu0 %225
    %v227 = vmul.f32 %v224, 0.03125
    %v228 = vmul.f32 %v226, 0.03125
    %v229 = vsub.f32 %v204, %v227
    %v230 = vsub.f32 %v205, %v228
    %v231 = vmul.f32 %v229, %v73
    %v232 = vmul.f32 %v230, %v73
    %v233 = vmul.f32 %v231, %v231
    %v234 = vmul.f32 %v232, %v232
    %235 = vadd.xlane.f32.xlu0 %v233
    %v236 = vpop.xlane.xlu0 %235
    %237 = vadd.xlane.f32.xlu0 %v234
    %v238 = vpop.xlane.xlu0 %237
    %v239 = vmul.f32 %v236, 0.03125
    %v240 = vmul.f32 %v238, 0.03125
    %v241 = vadd.f32 %v239, 1e-05
    %v242 = vadd.f32 %v240, 1e-05
    %v243 = vrsqrt.pop %v241
    %v244 = vrsqrt.pop %v242
    %v245 = vmul.f32 %v231, %v243
    %v246 = vmul.f32 %v232, %v244
    %v248 = vlaneseq
    %v249 = vshrl.u32 %v248, 7
    %v250 = vsub.s32 0, %v249
    %v251 = vrot.slane %v222, %v250
    %253 = vmatprep.subr.mxu0 0.0
    %254 = vmatpush1.msra.mxu0 %v206
    %255 = vmatprep.subr.mxu0 0.0
    %256 = vmatpush1.msra.mxu0 %v207
    %257 = vmatprep.subr.mxu0 0.0
    %258 = vmatpush1.msra.mxu0 %v208
    %259 = vmatprep.subr.mxu0 0.0
    %260 = vmatpush1.msra.mxu0 %v209
    %261 = vmatprep.subr.mxu0 0.0
    %262 = vmatpush1.msra.mxu0 %v210
    %263 = vmatprep.subr.mxu0 0.0
    %264 = vmatpush1.msra.mxu0 %v211
    %265 = vmatprep.subr.mxu0 0.0
    %266 = vmatpush1.msra.mxu0 %v212
    %267 = vmatprep.subr.mxu0 0.0
    %268 = vmatpush1.msra.mxu0 %v213
    %269 = vmatprep.subr.mxu0 0.0
    %270 = vmatpush1.msra.mxu0 %v214
    %271 = vmatprep.subr.mxu0 0.0
    %272 = vmatpush1.msra.mxu0 %v215
    %273 = vmatprep.subr.mxu0 0.0
    %274 = vmatpush1.msra.mxu0 %v216
    %275 = vmatprep.subr.mxu0 0.0
    %276 = vmatpush1.msra.mxu0 %v217
    %277 = vmatprep.subr.mxu0 0.0
    %278 = vmatpush1.msra.mxu0 %v218
    %279 = vmatprep.subr.mxu0 0.0
    %280 = vmatpush1.msra.mxu0 %v219
    %281 = vmatprep.subr.mxu0 0.0
    %282 = vmatpush1.msra.mxu0 %v220
    %283 = vmatprep.subr.mxu0 0.0
    %284 = vmatpush1.msra.mxu0 %v221
    %285 = vmatprep.subr.mxu0 0.0
    %286 = vmatpush1.msra.mxu0 0.0
    %287 = vmatprep.subr.mxu0 0.0
    %288 = vmatpush1.msra.mxu0 0.0
    %289 = vmatprep.subr.mxu0 0.0
    %290 = vmatpush1.msra.mxu0 0.0
    %291 = vmatprep.subr.mxu0 0.0
    %292 = vmatpush1.msra.mxu0 0.0
    %293 = vmatprep.subr.mxu0 0.0
    %294 = vmatpush1.msra.mxu0 0.0
    %295 = vmatprep.subr.mxu0 0.0
    %296 = vmatpush1.msra.mxu0 0.0
    %297 = vmatprep.subr.mxu0 0.0
    %298 = vmatpush1.msra.mxu0 0.0
    %299 = vmatprep.subr.mxu0 0.0
    %300 = vmatpush1.msra.mxu0 0.0
    %301 = vmatprep.subr.mxu0 0.0
    %302 = vmatpush1.msra.mxu0 0.0
    %303 = vmatprep.subr.mxu0 0.0
    %304 = vmatpush1.msra.mxu0 0.0
    %305 = vmatprep.subr.mxu0 0.0
    %306 = vmatpush1.msra.mxu0 0.0
    %307 = vmatprep.subr.mxu0 0.0
    %308 = vmatpush1.msra.mxu0 0.0
    %309 = vmatprep.subr.mxu0 0.0
    %310 = vmatpush1.msra.mxu0 0.0
    %311 = vmatprep.subr.mxu0 0.0
    %312 = vmatpush1.msra.mxu0 0.0
    %313 = vmatprep.subr.mxu0 0.0
    %314 = vmatpush1.msra.mxu0 0.0
    %315 = vmatprep.subr.mxu0 0.0
    %316 = vmatpush1.msra.mxu0 0.0
    %317 = vmatprep.mubr.f32.mxu0 0.0
    %318 = vmatmul.mubr.f32.gmra.mrb[0].mxu0 %v245
    %v319 = vpop.f32.mrb[0].mxu0
    %v320 = vadd.f32 %v251, %v319
    %v321 = vpop.f32.mrb[0].mxu0
    %322 = vmatprep.mubr.f32.mxu0 0.0
    %323 = vmatmul.mubr.f32.gmra.mrb[0].mxu0 %v246
    %v324 = vpop.f32.mrb[0].mxu0
    %v325 = vadd.f32 %v251, %v324
    %v326 = vpop.f32.mrb[0].mxu0
    %327 = vdwg.mxu0
    %v328 = vmul.f32 %v320, 0.5
    %v329 = vmul.f32 %v325, 0.5
    %v330 = vmul.f32 %v320, 0.70710677
    %v331 = vmul.f32 %v325, 0.70710677
    %v332 = verf.f32.pop %v330
    %v333 = verf.f32.pop %v331
    %v334 = vadd.f32 %v332, 1.0
    %v335 = vadd.f32 %v333, 1.0
    %v336 = vmul.f32 %v328, %v334
    %v337 = vmul.f32 %v329, %v335
    %v338 = vld [vmem:[#allocation6] sm:$0xff]
    %v339 = vld [vmem:[#allocation6 + $0x8] sm:$0xff]
    %v340 = vld [vmem:[#allocation6 + $0x10] sm:$0xff]
    %v341 = vld [vmem:[#allocation6 + $0x18] sm:$0xff]
    %v342 = vld [vmem:[#allocation6 + $0x20] sm:$0xff]
    %v343 = vld [vmem:[#allocation6 + $0x28] sm:$0xff]
    %v344 = vld [vmem:[#allocation6 + $0x30] sm:$0xff]
    %v345 = vld [vmem:[#allocation6 + $0x38] sm:$0xff]
    %v346 = vld [vmem:[#allocation6 + $0x40] sm:$0xff]
    %v347 = vld [vmem:[#allocation6 + $0x48] sm:$0xff]
    %v348 = vld [vmem:[#allocation6 + $0x50] sm:$0xff]
    %v349 = vld [vmem:[#allocation6 + $0x58] sm:$0xff]
    %v350 = vld [vmem:[#allocation6 + $0x60] sm:$0xff]
    %v351 = vld [vmem:[#allocation6 + $0x68] sm:$0xff]
    %v352 = vld [vmem:[#allocation6 + $0x70] sm:$0xff]
    %v353 = vld [vmem:[#allocation6 + $0x78] sm:$0xff]
    %v354 = vld [vmem:[%s6] sm:$0x1]
    %355 = vadd.xlane.f32.xlu0 %v336
    %v356 = vpop.xlane.xlu0 %355
    %357 = vadd.xlane.f32.xlu0 %v337
    %v358 = vpop.xlane.xlu0 %357
    %v359 = vmul.f32 %v356, 0.03125
    %v360 = vmul.f32 %v358, 0.03125
    %v361 = vsub.f32 %v336, %v359
    %v362 = vsub.f32 %v337, %v360
    %v363 = vmul.f32 %v361, %v73
    %v364 = vmul.f32 %v362, %v73
    %v365 = vmul.f32 %v363, %v363
    %v366 = vmul.f32 %v364, %v364
    %367 = vadd.xlane.f32.xlu0 %v365
    %v368 = vpop.xlane.xlu0 %367
    %369 = vadd.xlane.f32.xlu0 %v366
    %v370 = vpop.xlane.xlu0 %369
    %v371 = vmul.f32 %v368, 0.03125
    %v372 = vmul.f32 %v370, 0.03125
    %v373 = vadd.f32 %v371, 1e-05
    %v374 = vadd.f32 %v372, 1e-05
    %v375 = vrsqrt.pop %v373
    %v376 = vrsqrt.pop %v374
    %v377 = vmul.f32 %v363, %v375
    %v378 = vmul.f32 %v364, %v376
    %v380 = vlaneseq
    %v381 = vshrl.u32 %v380, 7
    %v382 = vsub.s32 0, %v381
    %v383 = vrot.slane %v354, %v382
    %385 = vmatprep.subr.mxu0 0.0
    %386 = vmatpush1.msra.mxu0 %v338
    %387 = vmatprep.subr.mxu0 0.0
    %388 = vmatpush1.msra.mxu0 %v339
    %389 = vmatprep.subr.mxu0 0.0
    %390 = vmatpush1.msra.mxu0 %v340
    %391 = vmatprep.subr.mxu0 0.0
    %392 = vmatpush1.msra.mxu0 %v341
    %393 = vmatprep.subr.mxu0 0.0
    %394 = vmatpush1.msra.mxu0 %v342
    %395 = vmatprep.subr.mxu0 0.0
    %396 = vmatpush1.msra.mxu0 %v343
    %397 = vmatprep.subr.mxu0 0.0
    %398 = vmatpush1.msra.mxu0 %v344
    %399 = vmatprep.subr.mxu0 0.0
    %400 = vmatpush1.msra.mxu0 %v345
    %401 = vmatprep.subr.mxu0 0.0
    %402 = vmatpush1.msra.mxu0 %v346
    %403 = vmatprep.subr.mxu0 0.0
    %404 = vmatpush1.msra.mxu0 %v347
    %405 = vmatprep.subr.mxu0 0.0
    %406 = vmatpush1.msra.mxu0 %v348
    %407 = vmatprep.subr.mxu0 0.0
    %408 = vmatpush1.msra.mxu0 %v349
    %409 = vmatprep.subr.mxu0 0.0
    %410 = vmatpush1.msra.mxu0 %v350
    %411 = vmatprep.subr.mxu0 0.0
    %412 = vmatpush1.msra.mxu0 %v351
    %413 = vmatprep.subr.mxu0 0.0
    %414 = vmatpush1.msra.mxu0 %v352
    %415 = vmatprep.subr.mxu0 0.0
    %416 = vmatpush1.msra.mxu0 %v353
    %417 = vmatprep.subr.mxu0 0.0
    %418 = vmatpush1.msra.mxu0 0.0
    %419 = vmatprep.subr.mxu0 0.0
    %420 = vmatpush1.msra.mxu0 0.0
    %421 = vmatprep.subr.mxu0 0.0
    %422 = vmatpush1.msra.mxu0 0.0
    %423 = vmatprep.subr.mxu0 0.0
    %424 = vmatpush1.msra.mxu0 0.0
    %425 = vmatprep.subr.mxu0 0.0
    %426 = vmatpush1.msra.mxu0 0.0
    %427 = vmatprep.subr.mxu0 0.0
    %428 = vmatpush1.msra.mxu0 0.0
    %429 = vmatprep.subr.mxu0 0.0
    %430 = vmatpush1.msra.mxu0 0.0
    %431 = vmatprep.subr.mxu0 0.0
    %432 = vmatpush1.msra.mxu0 0.0
    %433 = vmatprep.subr.mxu0 0.0
    %434 = vmatpush1.msra.mxu0 0.0
    %435 = vmatprep.subr.mxu0 0.0
    %436 = vmatpush1.msra.mxu0 0.0
    %437 = vmatprep.subr.mxu0 0.0
    %438 = vmatpush1.msra.mxu0 0.0
    %439 = vmatprep.subr.mxu0 0.0
    %440 = vmatpush1.msra.mxu0 0.0
    %441 = vmatprep.subr.mxu0 0.0
    %442 = vmatpush1.msra.mxu0 0.0
    %443 = vmatprep.subr.mxu0 0.0
    %444 = vmatpush1.msra.mxu0 0.0
    %445 = vmatprep.subr.mxu0 0.0
    %446 = vmatpush1.msra.mxu0 0.0
    %447 = vmatprep.subr.mxu0 0.0
    %448 = vmatpush1.msra.mxu0 0.0
    %449 = vmatprep.mubr.f32.mxu0 0.0
    %450 = vmatmul.mubr.f32.gmra.mrb[0].mxu0 %v377
    %v451 = vpop.f32.mrb[0].mxu0
    %v452 = vadd.f32 %v383, %v451
    %v453 = vpop.f32.mrb[0].mxu0
    %454 = vmatprep.mubr.f32.mxu0 0.0
    %455 = vmatmul.mubr.f32.gmra.mrb[0].mxu0 %v378
    %v456 = vpop.f32.mrb[0].mxu0
    %v457 = vadd.f32 %v383, %v456
    %v458 = vpop.f32.mrb[0].mxu0
    %459 = vdwg.mxu0
    %v460 = vmul.f32 %v452, 0.5
    %v461 = vmul.f32 %v457, 0.5
    %v462 = vmul.f32 %v452, 0.70710677
    %v463 = vmul.f32 %v457, 0.70710677
    %v464 = verf.f32.pop %v462
    %v465 = verf.f32.pop %v463
    %v466 = vadd.f32 %v464, 1.0
    %v467 = vadd.f32 %v465, 1.0
    %v468 = vmul.f32 %v460, %v466
    %v469 = vmul.f32 %v461, %v467
    %470 = vst [vmem:[%s7] sm:$0xff] %v468
    %471 = vst [vmem:[%s7 + $0x8] sm:$0xff] %v469
    // Predicated region
    $region42: #{prompt_token_refiner.1} parent=1 // pred_check
      _
    $region43: #{prompt_token_refiner.1} parent=1 // pred_check_branch
      %473 = sbr.rel (0) target = $region45
    $region44: #{prompt_token_refiner.1} parent=1 // pred_region
      _
    $region45: #{prompt_token_refiner.1} parent=1 // pred_fallthru
      _
    // Predicated region
    $region46: #{prompt_token_refiner.1} parent=1 // pred_check
      _
    $region47: #{prompt_token_refiner.1} parent=1 // pred_check_branch
      %475 = sbr.rel (0) target = $region49
    $region48: #{prompt_token_refiner.1} parent=1 // pred_region
      _
    $region49: #{prompt_token_refiner.1} parent=1 // pred_fallthru
      _
    %476 = vsyncpa [#allocation3], 1
    %477 = vsyncpa [#allocation5], 1

</llo_original>
